<compile_context>
chip_gen: v7x
topology: tpu7x:2x2x1
jax: 0.10.0
libtpu: 0.0.40
codegen_flags: <defaults>
</compile_context>

<pallas_src>
import jax
import jax.numpy as jnp
from jax import lax
from jax.experimental import pallas as pl
from jax.experimental.pallas import tpu as pltpu


# ------------------------------- wrapper -------------------------------------
def bilstm_max_forward(x, params):
    b, s, n, f = x.shape
    H = params['weight_hh_f'].shape[1]
    H4 = 4 * H
    out_dim = params['w2'].shape[0]

    T = b                                   # LSTM time axis = model batch b
    S = max(8, ((n + 7) // 8) * 8)          # LSTM batch = nSeries, padded to 8 sublanes

    # Only LSTM-batch element s-1 reaches the output head -> keep just those sequences.
    x_last = x[:, s - 1, :, :].astype(jnp.float32)                  # (T, n, f)
    x_pad = jnp.pad(x_last, ((0, 0), (0, S - n), (0, 0)))           # (T, S, f), dead pad rows
    x2d = x_pad.reshape(T * S, f)                                   # row = t*S + series

    # Weight prep (all done once, outside the kernel).
    # Column layout everywhere: [fwd i f g o | bwd i f g o]  (PyTorch gate order).
    win = jnp.concatenate([params['weight_ih_f'].T,
                           params['weight_ih_b'].T], axis=1)        # (f, 8H)
    b_in = jnp.concatenate([params['bias_ih_f'] + params['bias_hh_f'],
                            params['bias_ih_b'] + params['bias_hh_b']]).reshape(1, 8 * H)
    whh_bd = jnp.zeros((2 * H, 8 * H), jnp.float32)                 # block-diagonal Whh
    whh_bd = whh_bd.at[0:H, 0:H4].set(params['weight_hh_f'].T)
    whh_bd = whh_bd.at[H:2 * H, H4:2 * H4].set(params['weight_hh_b'].T)
    w1_t = params['w1'].T                                           # (2H, H)
    b1 = params['b1'].reshape(1, H)
    w2_t = params['w2'].T                                           # (H, out_dim)
    b2 = params['b2'].reshape(1, out_dim)

    # --------------------------- Pallas kernel -------------------------------
    def kernel(x_ref, win_ref, bin_ref, whh_ref, w1_ref, b1_ref, w2_ref, b2_ref,
               out_ref, gin_ref, seqf_ref, seqb_ref):
        # 1) Hoisted input projection for all time steps and both directions:
        #    (T*S, F) @ (F, 8H) + bias  -> VMEM scratch.
        gin_ref[...] = (jnp.dot(x_ref[...], win_ref[...],
                                preferred_element_type=jnp.float32) + bin_ref[...])

        def gates_act(g):
            # g: (S, 4H) in PyTorch gate order i, f, g, o.
            # One full-width sigmoid (4H = lane-dense) instead of three 32-lane slices;
            # tanh only on the g-gate columns.
            sg = jax.nn.sigmoid(g)
            i_g = sg[:, 0:H]
            f_g = sg[:, H:2 * H]
            o_g = sg[:, 3 * H:4 * H]
            g_g = jnp.tanh(g[:, 2 * H:3 * H])
            return i_g, f_g, g_g, o_g

        def first_step(g):
            # h0 = c0 = 0  ->  skip the recurrent matmul and the f*c term.
            i_g, _, g_g, o_g = gates_act(g)
            c = i_g * g_g
            return o_g * jnp.tanh(c), c

        # Peeled step: forward time 0, backward time T-1.
        h_f, c_f = first_step(gin_ref[0:S, 0:H4])
        h_b, c_b = first_step(gin_ref[(T - 1) * S:T * S, H4:2 * H4])
        seqf_ref[0:S, :] = h_f
        seqb_ref[(T - 1) * S:T * S, :] = h_b

        # Remaining steps, fully unrolled with static slice offsets (T is small & static).
        # Forward walks t = 1..T-1; backward walks tb = T-2..0 in the same iteration.
        for t in range(1, T):
            tb = T - 1 - t
            # Fused fwd+bwd recurrent matmul: (S, 2H) @ block-diag (2H, 8H) -> (S, 8H).
            rec = jnp.dot(jnp.concatenate([h_f, h_b], axis=1), whh_ref[...],
                          preferred_element_type=jnp.float32)
            gf = rec[:, 0:H4] + gin_ref[t * S:(t + 1) * S, 0:H4]
            gb = rec[:, H4:2 * H4] + gin_ref[tb * S:(tb + 1) * S, H4:2 * H4]

            i_f, f_f, g_f, o_f = gates_act(gf)
            c_f = f_f * c_f + i_f * g_f
            h_f = o_f * jnp.tanh(c_f)

            i_b, f_b, g_b, o_b = gates_act(gb)
            c_b = f_b * c_b + i_b * g_b
            h_b = o_b * jnp.tanh(c_b)

            seqf_ref[t * S:(t + 1) * S, :] = h_f
            seqb_ref[tb * S:(tb + 1) * S, :] = h_b

        # Output head: linear_1 -> (eval-mode dropout = identity) -> linear_2, applied
        # to all T*S rows at once (padding rows are dead and sliced off in the wrapper).
        # Note: default matmul precision is kept; it passes the 5e-3 check at these shapes.
        w1 = w1_ref[...]
        h1 = (jnp.dot(seqf_ref[...], w1[0:H, :], preferred_element_type=jnp.float32)
              + jnp.dot(seqb_ref[...], w1[H:2 * H, :], preferred_element_type=jnp.float32)
              + b1_ref[...])
        out_ref[...] = (jnp.dot(h1, w2_ref[...], preferred_element_type=jnp.float32)
                        + b2_ref[...]).astype(out_ref.dtype)

    def full_spec(arr):
        nd = arr.ndim
        return pl.BlockSpec(arr.shape, lambda i, _nd=nd: (0,) * _nd)

    args = (x2d, win, b_in, whh_bd, w1_t, b1, w2_t, b2)
    grid_spec = pltpu.PrefetchScalarGridSpec(
        num_scalar_prefetch=0,
        grid=(1,),                                   # single invocation: no n-grid replay
        in_specs=[full_spec(a) for a in args],
        out_specs=pl.BlockSpec((T * S, out_dim), lambda i: (0, 0)),
        scratch_shapes=[
            pltpu.VMEM((T * S, 8 * H), jnp.float32),  # hoisted input projection
            pltpu.VMEM((T * S, H), jnp.float32),      # forward hidden per time step
            pltpu.VMEM((T * S, H), jnp.float32),      # backward hidden per time step
        ],
    )

    out_flat = pl.pallas_call(
        kernel,
        out_shape=jax.ShapeDtypeStruct((T * S, out_dim), jnp.float32),
        grid_spec=grid_spec,
        compiler_params=pltpu.CompilerParams(dimension_semantics=("arbitrary",)),
    )(*args)

    out = out_flat.reshape(T, S, out_dim)[:, :n, :]   # (b, n, out_dim); drop pad rows
    return jnp.transpose(out, (0, 2, 1))              # (b, out_dim, n)


# --------------------------- pure-JAX reference ------------------------------
# Full (un-simplified) reference: runs the bi-LSTM over the entire (time=b, batch=s)
# input per series, exactly mirroring the PyTorch module, to validate the kernel's
# dead-batch-row elimination.
def _ref_lstm_dir(x_seq, wih, whh, bias):
    H = whh.shape[1]
    S = x_seq.shape[1]
    h0 = jnp.zeros((S, H), jnp.float32)
    c0 = jnp.zeros((S, H), jnp.float32)

    def step(carry, x_t):
        h, c = carry
        gates = (jnp.dot(x_t, wih.T, precision=lax.Precision.HIGHEST)
                 + jnp.dot(h, whh.T, precision=lax.Precision.HIGHEST) + bias)
        i_g = jax.nn.sigmoid(gates[:, 0:H])
        f_g = jax.nn.sigmoid(gates[:, H:2 * H])
        g_g = jnp.tanh(gates[:, 2 * H:3 * H])
        o_g = jax.nn.sigmoid(gates[:, 3 * H:4 * H])
        c = f_g * c + i_g * g_g
        h = o_g * jnp.tanh(c)
        return (h, c), h

    _, hs = lax.scan(step, (h0, c0), x_seq)
    return hs


def ref_forward(x, params):
    b, s, n, f = x.shape
    bf = params['bias_ih_f'] + params['bias_hh_f']
    bb = params['bias_ih_b'] + params['bias_hh_b']
    outs = []
    for i in range(n):
        x_in = x[:, :, i, :]                                     # (b, s, f): time=b, batch=s
        hs_f = _ref_lstm_dir(x_in, params['weight_ih_f'], params['weight_hh_f'], bf)
        hs_b = _ref_lstm_dir(x_in[::-1], params['weight_ih_b'], params['weight_hh_b'], bb)[::-1]
        out = jnp.concatenate([hs_f, hs_b], axis=-1)             # (b, s, 2H)
        last = out[:, -1, :]                                     # (b, 2H)
        h1 = jnp.dot(last, params['w1'].T, precision=lax.Precision.HIGHEST) + params['b1']
        y = jnp.dot(h1, params['w2'].T, precision=lax.Precision.HIGHEST) + params['b2']
        outs.append(y[:, :, None])
    return jnp.concatenate(outs, axis=2)                         # (b, out_dim, n)


# ------------------------------ param init -----------------------------------
def init_params(key, in_dim, hidden, out_dim):
    ks = jax.random.split(key, 12)
    bound = 1.0 / float(hidden) ** 0.5

    def u(kk, shape):
        return jax.random.uniform(kk, shape, jnp.float32, -bound, bound)

    return dict(
        weight_ih_f=u(ks[0], (4 * hidden, in_dim)),
        weight_hh_f=u(ks[1], (4 * hidden, hidden)),
        bias_ih_f=u(ks[2], (4 * hidden,)),
        bias_hh_f=u(ks[3], (4 * hidden,)),
        weight_ih_b=u(ks[4], (4 * hidden, in_dim)),
        weight_hh_b=u(ks[5], (4 * hidden, hidden)),
        bias_ih_b=u(ks[6], (4 * hidden,)),
        bias_hh_b=u(ks[7], (4 * hidden,)),
        w1=u(ks[8], (hidden, 2 * hidden)),
        b1=u(ks[9], (hidden,)),
        w2=u(ks[10], (out_dim, hidden)),
        b2=u(ks[11], (out_dim,)),
    )


if __name__ == "__main__":
    # small shapes: batch=4, seq=8, nSeries=3, in_dim=8, hidden=32, out_dim=4, layers=1
    b, s, n, f = 4, 8, 3, 8
    hidden, out_dim = 32, 4

    key = jax.random.PRNGKey(0)
    kx, kp = jax.random.split(key)
    x = jax.random.normal(kx, (b, s, n, f), jnp.float32)
    params = init_params(kp, f, hidden, out_dim)

    out = jax.block_until_ready(bilstm_max_forward(x, params))
    ref = jax.block_until_ready(ref_forward(x, params))

    assert out.shape == (b, out_dim, n), out.shape
    max_err = float(jnp.max(jnp.abs(out - ref)))
    assert max_err < 5e-3, f"max abs err {max_err}"
    print("KERNEL_OK")
</pallas_src>

<mosaic_0001>
module attributes {stable_mosaic.version = 11 : i64} {
  func.func @kernel(%arg0: i32, %arg1: memref<32x8xf32, #tpu.memory_space<vmem>>, %arg2: memref<8x256xf32, #tpu.memory_space<vmem>>, %arg3: memref<1x256xf32, #tpu.memory_space<vmem>>, %arg4: memref<64x256xf32, #tpu.memory_space<vmem>>, %arg5: memref<64x32xf32, #tpu.memory_space<vmem>>, %arg6: memref<1x32xf32, #tpu.memory_space<vmem>>, %arg7: memref<32x4xf32, #tpu.memory_space<vmem>>, %arg8: memref<1x4xf32, #tpu.memory_space<vmem>>, %arg9: memref<32x4xf32, #tpu.memory_space<vmem>>, %arg10: memref<32x256xf32, #tpu.memory_space<vmem>>, %arg11: memref<32x32xf32, #tpu.memory_space<vmem>>, %arg12: memref<32x32xf32, #tpu.memory_space<vmem>>) attributes {dimension_semantics = [#tpu.dimension_semantics<arbitrary>], iteration_bounds = array<i64: 1>, scalar_prefetch = 0 : i64, scratch_operands = 3 : i64, tpu.core_type = #tpu.core_type<tc>, window_params = [{pipeline_mode = #tpu.pipeline_mode<synchronous>, transform_indices = @transform_0, window_bounds = array<i64: 32, 8>}, {pipeline_mode = #tpu.pipeline_mode<synchronous>, transform_indices = @transform_1, window_bounds = array<i64: 8, 256>}, {pipeline_mode = #tpu.pipeline_mode<synchronous>, transform_indices = @transform_2, window_bounds = array<i64: 1, 256>}, {pipeline_mode = #tpu.pipeline_mode<synchronous>, transform_indices = @transform_3, window_bounds = array<i64: 64, 256>}, {pipeline_mode = #tpu.pipeline_mode<synchronous>, transform_indices = @transform_4, window_bounds = array<i64: 64, 32>}, {pipeline_mode = #tpu.pipeline_mode<synchronous>, transform_indices = @transform_5, window_bounds = array<i64: 1, 32>}, {pipeline_mode = #tpu.pipeline_mode<synchronous>, transform_indices = @transform_6, window_bounds = array<i64: 32, 4>}, {pipeline_mode = #tpu.pipeline_mode<synchronous>, transform_indices = @transform_7, window_bounds = array<i64: 1, 4>}, {pipeline_mode = #tpu.pipeline_mode<synchronous>, transform_indices = @transform_8, window_bounds = array<i64: 32, 4>}]} {
    %c0 = arith.constant 0 : index
    %c0_0 = arith.constant 0 : index
    %0 = vector.load %arg1[%c0, %c0_0] : memref<32x8xf32, #tpu.memory_space<vmem>>, vector<32x8xf32>
    %c0_1 = arith.constant 0 : index
    %c0_2 = arith.constant 0 : index
    %1 = vector.load %arg2[%c0_1, %c0_2] : memref<8x256xf32, #tpu.memory_space<vmem>>, vector<8x256xf32>
    %cst = arith.constant dense<0.000000e+00> : vector<32x256xf32>
    %2 = tpu.matmul %0, %1, %cst {dimension_numbers = #tpu.dot_dimension_numbers<[1], [0], [0], [1], [0, 0, 1, 1], [], []>} : vector<32x8xf32>, vector<8x256xf32>, vector<32x256xf32> -> vector<32x256xf32>
    %c0_3 = arith.constant 0 : index
    %c0_4 = arith.constant 0 : index
    %3 = vector.load %arg3[%c0_3, %c0_4] : memref<1x256xf32, #tpu.memory_space<vmem>>, vector<1x256xf32>
    %4 = vector.broadcast %3 : vector<1x256xf32> to vector<32x256xf32>
    %5 = arith.addf %2, %4 : vector<32x256xf32>
    %c0_5 = arith.constant 0 : index
    %c0_6 = arith.constant 0 : index
    %6 = vector.load %arg10[%c0_5, %c0_6] : memref<32x256xf32, #tpu.memory_space<vmem>>, vector<32x256xf32>
    tpu.vector_store %arg10[%c0_5, %c0_6], %5 {strides = array<i32>} : memref<32x256xf32, #tpu.memory_space<vmem>>, vector<32x256xf32>,
    %c0_7 = arith.constant 0 : index
    %c0_8 = arith.constant 0 : index
    %7 = vector.load %arg10[%c0_7, %c0_8] : memref<32x256xf32, #tpu.memory_space<vmem>>, vector<8x128xf32>
    %8 = arith.negf %7 : vector<8x128xf32>
    %9 = math.exp %8 : vector<8x128xf32>
    %cst_9 = arith.constant 1.000000e+00 : f32
    %10 = vector.broadcast %cst_9 : f32 to vector<8x128xf32>
    %11 = arith.addf %10, %9 : vector<8x128xf32>
    %12 = arith.divf %10, %11 : vector<8x128xf32>
    %13 = vector.extract_strided_slice %12 {offsets = [0, 0], sizes = [8, 32], strides = [1, 1]} : vector<8x128xf32> to vector<8x32xf32>
    %14 = vector.extract_strided_slice %12 {offsets = [0, 96], sizes = [8, 32], strides = [1, 1]} : vector<8x128xf32> to vector<8x32xf32>
    %15 = vector.extract_strided_slice %7 {offsets = [0, 64], sizes = [8, 32], strides = [1, 1]} : vector<8x128xf32> to vector<8x32xf32>
    %16 = math.tanh %15 : vector<8x32xf32>
    %17 = arith.mulf %13, %16 : vector<8x32xf32>
    %18 = math.tanh %17 : vector<8x32xf32>
    %19 = arith.mulf %14, %18 : vector<8x32xf32>
    %c24 = arith.constant 24 : index
    %c128 = arith.constant 128 : index
    %20 = vector.load %arg10[%c24, %c128] : memref<32x256xf32, #tpu.memory_space<vmem>>, vector<8x128xf32>
    %21 = arith.negf %20 : vector<8x128xf32>
    %22 = math.exp %21 : vector<8x128xf32>
    %cst_10 = arith.constant 1.000000e+00 : f32
    %23 = vector.broadcast %cst_10 : f32 to vector<8x128xf32>
    %24 = arith.addf %23, %22 : vector<8x128xf32>
    %25 = arith.divf %23, %24 : vector<8x128xf32>
    %26 = vector.extract_strided_slice %25 {offsets = [0, 0], sizes = [8, 32], strides = [1, 1]} : vector<8x128xf32> to vector<8x32xf32>
    %27 = vector.extract_strided_slice %25 {offsets = [0, 96], sizes = [8, 32], strides = [1, 1]} : vector<8x128xf32> to vector<8x32xf32>
    %28 = vector.extract_strided_slice %20 {offsets = [0, 64], sizes = [8, 32], strides = [1, 1]} : vector<8x128xf32> to vector<8x32xf32>
    %29 = math.tanh %28 : vector<8x32xf32>
    %30 = arith.mulf %26, %29 : vector<8x32xf32>
    %31 = math.tanh %30 : vector<8x32xf32>
    %32 = arith.mulf %27, %31 : vector<8x32xf32>
    %c0_11 = arith.constant 0 : index
    %c0_12 = arith.constant 0 : index
    %33 = vector.load %arg11[%c0_11, %c0_12] : memref<32x32xf32, #tpu.memory_space<vmem>>, vector<8x32xf32>
    tpu.vector_store %arg11[%c0_11, %c0_12], %19 {strides = array<i32>} : memref<32x32xf32, #tpu.memory_space<vmem>>, vector<8x32xf32>,
    %c24_13 = arith.constant 24 : index
    %c0_14 = arith.constant 0 : index
    %34 = vector.load %arg12[%c24_13, %c0_14] : memref<32x32xf32, #tpu.memory_space<vmem>>, vector<8x32xf32>
    tpu.vector_store %arg12[%c24_13, %c0_14], %32 {strides = array<i32>} : memref<32x32xf32, #tpu.memory_space<vmem>>, vector<8x32xf32>,
    %35 = tpu.concatenate %19, %32 in 1 : vector<8x32xf32>, vector<8x32xf32> -> vector<8x64xf32>
    %c0_15 = arith.constant 0 : index
    %c0_16 = arith.constant 0 : index
    %36 = vector.load %arg4[%c0_15, %c0_16] : memref<64x256xf32, #tpu.memory_space<vmem>>, vector<64x256xf32>
    %cst_17 = arith.constant dense<0.000000e+00> : vector<8x256xf32>
    %37 = tpu.matmul %35, %36, %cst_17 {dimension_numbers = #tpu.dot_dimension_numbers<[1], [0], [0], [1], [0, 0, 1, 1], [], []>} : vector<8x64xf32>, vector<64x256xf32>, vector<8x256xf32> -> vector<8x256xf32>
    %38 = vector.extract_strided_slice %37 {offsets = [0, 0], sizes = [8, 128], strides = [1, 1]} : vector<8x256xf32> to vector<8x128xf32>
    %c8 = arith.constant 8 : index
    %c0_18 = arith.constant 0 : index
    %39 = vector.load %arg10[%c8, %c0_18] : memref<32x256xf32, #tpu.memory_space<vmem>>, vector<8x128xf32>
    %40 = arith.addf %38, %39 : vector<8x128xf32>
    %41 = vector.extract_strided_slice %37 {offsets = [0, 128], sizes = [8, 128], strides = [1, 1]} : vector<8x256xf32> to vector<8x128xf32>
    %c16 = arith.constant 16 : index
    %c128_19 = arith.constant 128 : index
    %42 = vector.load %arg10[%c16, %c128_19] : memref<32x256xf32, #tpu.memory_space<vmem>>, vector<8x128xf32>
    %43 = arith.addf %41, %42 : vector<8x128xf32>
    %44 = arith.negf %40 : vector<8x128xf32>
    %45 = math.exp %44 : vector<8x128xf32>
    %cst_20 = arith.constant 1.000000e+00 : f32
    %46 = vector.broadcast %cst_20 : f32 to vector<8x128xf32>
    %47 = arith.addf %46, %45 : vector<8x128xf32>
    %48 = arith.divf %46, %47 : vector<8x128xf32>
    %49 = vector.extract_strided_slice %48 {offsets = [0, 0], sizes = [8, 32], strides = [1, 1]} : vector<8x128xf32> to vector<8x32xf32>
    %50 = vector.extract_strided_slice %48 {offsets = [0, 32], sizes = [8, 32], strides = [1, 1]} : vector<8x128xf32> to vector<8x32xf32>
    %51 = vector.extract_strided_slice %48 {offsets = [0, 96], sizes = [8, 32], strides = [1, 1]} : vector<8x128xf32> to vector<8x32xf32>
    %52 = vector.extract_strided_slice %40 {offsets = [0, 64], sizes = [8, 32], strides = [1, 1]} : vector<8x128xf32> to vector<8x32xf32>
    %53 = math.tanh %52 : vector<8x32xf32>
    %54 = arith.mulf %50, %17 : vector<8x32xf32>
    %55 = arith.mulf %49, %53 : vector<8x32xf32>
    %56 = arith.addf %54, %55 : vector<8x32xf32>
    %57 = math.tanh %56 : vector<8x32xf32>
    %58 = arith.mulf %51, %57 : vector<8x32xf32>
    %59 = arith.negf %43 : vector<8x128xf32>
    %60 = math.exp %59 : vector<8x128xf32>
    %cst_21 = arith.constant 1.000000e+00 : f32
    %61 = vector.broadcast %cst_21 : f32 to vector<8x128xf32>
    %62 = arith.addf %61, %60 : vector<8x128xf32>
    %63 = arith.divf %61, %62 : vector<8x128xf32>
    %64 = vector.extract_strided_slice %63 {offsets = [0, 0], sizes = [8, 32], strides = [1, 1]} : vector<8x128xf32> to vector<8x32xf32>
    %65 = vector.extract_strided_slice %63 {offsets = [0, 32], sizes = [8, 32], strides = [1, 1]} : vector<8x128xf32> to vector<8x32xf32>
    %66 = vector.extract_strided_slice %63 {offsets = [0, 96], sizes = [8, 32], strides = [1, 1]} : vector<8x128xf32> to vector<8x32xf32>
    %67 = vector.extract_strided_slice %43 {offsets = [0, 64], sizes = [8, 32], strides = [1, 1]} : vector<8x128xf32> to vector<8x32xf32>
    %68 = math.tanh %67 : vector<8x32xf32>
    %69 = arith.mulf %65, %30 : vector<8x32xf32>
    %70 = arith.mulf %64, %68 : vector<8x32xf32>
    %71 = arith.addf %69, %70 : vector<8x32xf32>
    %72 = math.tanh %71 : vector<8x32xf32>
    %73 = arith.mulf %66, %72 : vector<8x32xf32>
    %c8_22 = arith.constant 8 : index
    %c0_23 = arith.constant 0 : index
    %74 = vector.load %arg11[%c8_22, %c0_23] : memref<32x32xf32, #tpu.memory_space<vmem>>, vector<8x32xf32>
    tpu.vector_store %arg11[%c8_22, %c0_23], %58 {strides = array<i32>} : memref<32x32xf32, #tpu.memory_space<vmem>>, vector<8x32xf32>,
    %c16_24 = arith.constant 16 : index
    %c0_25 = arith.constant 0 : index
    %75 = vector.load %arg12[%c16_24, %c0_25] : memref<32x32xf32, #tpu.memory_space<vmem>>, vector<8x32xf32>
    tpu.vector_store %arg12[%c16_24, %c0_25], %73 {strides = array<i32>} : memref<32x32xf32, #tpu.memory_space<vmem>>, vector<8x32xf32>,
    %76 = tpu.concatenate %58, %73 in 1 : vector<8x32xf32>, vector<8x32xf32> -> vector<8x64xf32>
    %c0_26 = arith.constant 0 : index
    %c0_27 = arith.constant 0 : index
    %77 = vector.load %arg4[%c0_26, %c0_27] : memref<64x256xf32, #tpu.memory_space<vmem>>, vector<64x256xf32>
    %cst_28 = arith.constant dense<0.000000e+00> : vector<8x256xf32>
    %78 = tpu.matmul %76, %77, %cst_28 {dimension_numbers = #tpu.dot_dimension_numbers<[1], [0], [0], [1], [0, 0, 1, 1], [], []>} : vector<8x64xf32>, vector<64x256xf32>, vector<8x256xf32> -> vector<8x256xf32>
    %79 = vector.extract_strided_slice %78 {offsets = [0, 0], sizes = [8, 128], strides = [1, 1]} : vector<8x256xf32> to vector<8x128xf32>
    %c16_29 = arith.constant 16 : index
    %c0_30 = arith.constant 0 : index
    %80 = vector.load %arg10[%c16_29, %c0_30] : memref<32x256xf32, #tpu.memory_space<vmem>>, vector<8x128xf32>
    %81 = arith.addf %79, %80 : vector<8x128xf32>
    %82 = vector.extract_strided_slice %78 {offsets = [0, 128], sizes = [8, 128], strides = [1, 1]} : vector<8x256xf32> to vector<8x128xf32>
    %c8_31 = arith.constant 8 : index
    %c128_32 = arith.constant 128 : index
    %83 = vector.load %arg10[%c8_31, %c128_32] : memref<32x256xf32, #tpu.memory_space<vmem>>, vector<8x128xf32>
    %84 = arith.addf %82, %83 : vector<8x128xf32>
    %85 = arith.negf %81 : vector<8x128xf32>
    %86 = math.exp %85 : vector<8x128xf32>
    %cst_33 = arith.constant 1.000000e+00 : f32
    %87 = vector.broadcast %cst_33 : f32 to vector<8x128xf32>
    %88 = arith.addf %87, %86 : vector<8x128xf32>
    %89 = arith.divf %87, %88 : vector<8x128xf32>
    %90 = vector.extract_strided_slice %89 {offsets = [0, 0], sizes = [8, 32], strides = [1, 1]} : vector<8x128xf32> to vector<8x32xf32>
    %91 = vector.extract_strided_slice %89 {offsets = [0, 32], sizes = [8, 32], strides = [1, 1]} : vector<8x128xf32> to vector<8x32xf32>
    %92 = vector.extract_strided_slice %89 {offsets = [0, 96], sizes = [8, 32], strides = [1, 1]} : vector<8x128xf32> to vector<8x32xf32>
    %93 = vector.extract_strided_slice %81 {offsets = [0, 64], sizes = [8, 32], strides = [1, 1]} : vector<8x128xf32> to vector<8x32xf32>
    %94 = math.tanh %93 : vector<8x32xf32>
    %95 = arith.mulf %91, %56 : vector<8x32xf32>
    %96 = arith.mulf %90, %94 : vector<8x32xf32>
    %97 = arith.addf %95, %96 : vector<8x32xf32>
    %98 = math.tanh %97 : vector<8x32xf32>
    %99 = arith.mulf %92, %98 : vector<8x32xf32>
    %100 = arith.negf %84 : vector<8x128xf32>
    %101 = math.exp %100 : vector<8x128xf32>
    %cst_34 = arith.constant 1.000000e+00 : f32
    %102 = vector.broadcast %cst_34 : f32 to vector<8x128xf32>
    %103 = arith.addf %102, %101 : vector<8x128xf32>
    %104 = arith.divf %102, %103 : vector<8x128xf32>
    %105 = vector.extract_strided_slice %104 {offsets = [0, 0], sizes = [8, 32], strides = [1, 1]} : vector<8x128xf32> to vector<8x32xf32>
    %106 = vector.extract_strided_slice %104 {offsets = [0, 32], sizes = [8, 32], strides = [1, 1]} : vector<8x128xf32> to vector<8x32xf32>
    %107 = vector.extract_strided_slice %104 {offsets = [0, 96], sizes = [8, 32], strides = [1, 1]} : vector<8x128xf32> to vector<8x32xf32>
    %108 = vector.extract_strided_slice %84 {offsets = [0, 64], sizes = [8, 32], strides = [1, 1]} : vector<8x128xf32> to vector<8x32xf32>
    %109 = math.tanh %108 : vector<8x32xf32>
    %110 = arith.mulf %106, %71 : vector<8x32xf32>
    %111 = arith.mulf %105, %109 : vector<8x32xf32>
    %112 = arith.addf %110, %111 : vector<8x32xf32>
    %113 = math.tanh %112 : vector<8x32xf32>
    %114 = arith.mulf %107, %113 : vector<8x32xf32>
    %c16_35 = arith.constant 16 : index
    %c0_36 = arith.constant 0 : index
    %115 = vector.load %arg11[%c16_35, %c0_36] : memref<32x32xf32, #tpu.memory_space<vmem>>, vector<8x32xf32>
    tpu.vector_store %arg11[%c16_35, %c0_36], %99 {strides = array<i32>} : memref<32x32xf32, #tpu.memory_space<vmem>>, vector<8x32xf32>,
    %c8_37 = arith.constant 8 : index
    %c0_38 = arith.constant 0 : index
    %116 = vector.load %arg12[%c8_37, %c0_38] : memref<32x32xf32, #tpu.memory_space<vmem>>, vector<8x32xf32>
    tpu.vector_store %arg12[%c8_37, %c0_38], %114 {strides = array<i32>} : memref<32x32xf32, #tpu.memory_space<vmem>>, vector<8x32xf32>,
    %117 = tpu.concatenate %99, %114 in 1 : vector<8x32xf32>, vector<8x32xf32> -> vector<8x64xf32>
    %c0_39 = arith.constant 0 : index
    %c0_40 = arith.constant 0 : index
    %118 = vector.load %arg4[%c0_39, %c0_40] : memref<64x256xf32, #tpu.memory_space<vmem>>, vector<64x256xf32>
    %cst_41 = arith.constant dense<0.000000e+00> : vector<8x256xf32>
    %119 = tpu.matmul %117, %118, %cst_41 {dimension_numbers = #tpu.dot_dimension_numbers<[1], [0], [0], [1], [0, 0, 1, 1], [], []>} : vector<8x64xf32>, vector<64x256xf32>, vector<8x256xf32> -> vector<8x256xf32>
    %120 = vector.extract_strided_slice %119 {offsets = [0, 0], sizes = [8, 128], strides = [1, 1]} : vector<8x256xf32> to vector<8x128xf32>
    %c24_42 = arith.constant 24 : index
    %c0_43 = arith.constant 0 : index
    %121 = vector.load %arg10[%c24_42, %c0_43] : memref<32x256xf32, #tpu.memory_space<vmem>>, vector<8x128xf32>
    %122 = arith.addf %120, %121 : vector<8x128xf32>
    %123 = vector.extract_strided_slice %119 {offsets = [0, 128], sizes = [8, 128], strides = [1, 1]} : vector<8x256xf32> to vector<8x128xf32>
    %c0_44 = arith.constant 0 : index
    %c128_45 = arith.constant 128 : index
    %124 = vector.load %arg10[%c0_44, %c128_45] : memref<32x256xf32, #tpu.memory_space<vmem>>, vector<8x128xf32>
    %125 = arith.addf %123, %124 : vector<8x128xf32>
    %126 = arith.negf %122 : vector<8x128xf32>
    %127 = math.exp %126 : vector<8x128xf32>
    %cst_46 = arith.constant 1.000000e+00 : f32
    %128 = vector.broadcast %cst_46 : f32 to vector<8x128xf32>
    %129 = arith.addf %128, %127 : vector<8x128xf32>
    %130 = arith.divf %128, %129 : vector<8x128xf32>
    %131 = vector.extract_strided_slice %130 {offsets = [0, 0], sizes = [8, 32], strides = [1, 1]} : vector<8x128xf32> to vector<8x32xf32>
    %132 = vector.extract_strided_slice %130 {offsets = [0, 32], sizes = [8, 32], strides = [1, 1]} : vector<8x128xf32> to vector<8x32xf32>
    %133 = vector.extract_strided_slice %130 {offsets = [0, 96], sizes = [8, 32], strides = [1, 1]} : vector<8x128xf32> to vector<8x32xf32>
    %134 = vector.extract_strided_slice %122 {offsets = [0, 64], sizes = [8, 32], strides = [1, 1]} : vector<8x128xf32> to vector<8x32xf32>
    %135 = math.tanh %134 : vector<8x32xf32>
    %136 = arith.mulf %132, %97 : vector<8x32xf32>
    %137 = arith.mulf %131, %135 : vector<8x32xf32>
    %138 = arith.addf %136, %137 : vector<8x32xf32>
    %139 = math.tanh %138 : vector<8x32xf32>
    %140 = arith.mulf %133, %139 : vector<8x32xf32>
    %141 = arith.negf %125 : vector<8x128xf32>
    %142 = math.exp %141 : vector<8x128xf32>
    %cst_47 = arith.constant 1.000000e+00 : f32
    %143 = vector.broadcast %cst_47 : f32 to vector<8x128xf32>
    %144 = arith.addf %143, %142 : vector<8x128xf32>
    %145 = arith.divf %143, %144 : vector<8x128xf32>
    %146 = vector.extract_strided_slice %145 {offsets = [0, 0], sizes = [8, 32], strides = [1, 1]} : vector<8x128xf32> to vector<8x32xf32>
    %147 = vector.extract_strided_slice %145 {offsets = [0, 32], sizes = [8, 32], strides = [1, 1]} : vector<8x128xf32> to vector<8x32xf32>
    %148 = vector.extract_strided_slice %145 {offsets = [0, 96], sizes = [8, 32], strides = [1, 1]} : vector<8x128xf32> to vector<8x32xf32>
    %149 = vector.extract_strided_slice %125 {offsets = [0, 64], sizes = [8, 32], strides = [1, 1]} : vector<8x128xf32> to vector<8x32xf32>
    %150 = math.tanh %149 : vector<8x32xf32>
    %151 = arith.mulf %147, %112 : vector<8x32xf32>
    %152 = arith.mulf %146, %150 : vector<8x32xf32>
    %153 = arith.addf %151, %152 : vector<8x32xf32>
    %154 = math.tanh %153 : vector<8x32xf32>
    %155 = arith.mulf %148, %154 : vector<8x32xf32>
    %c24_48 = arith.constant 24 : index
    %c0_49 = arith.constant 0 : index
    %156 = vector.load %arg11[%c24_48, %c0_49] : memref<32x32xf32, #tpu.memory_space<vmem>>, vector<8x32xf32>
    tpu.vector_store %arg11[%c24_48, %c0_49], %140 {strides = array<i32>} : memref<32x32xf32, #tpu.memory_space<vmem>>, vector<8x32xf32>,
    %c0_50 = arith.constant 0 : index
    %c0_51 = arith.constant 0 : index
    %157 = vector.load %arg12[%c0_50, %c0_51] : memref<32x32xf32, #tpu.memory_space<vmem>>, vector<8x32xf32>
    tpu.vector_store %arg12[%c0_50, %c0_51], %155 {strides = array<i32>} : memref<32x32xf32, #tpu.memory_space<vmem>>, vector<8x32xf32>,
    %c0_52 = arith.constant 0 : index
    %c0_53 = arith.constant 0 : index
    %158 = vector.load %arg5[%c0_52, %c0_53] : memref<64x32xf32, #tpu.memory_space<vmem>>, vector<64x32xf32>
    %c0_54 = arith.constant 0 : index
    %c0_55 = arith.constant 0 : index
    %159 = vector.load %arg11[%c0_54, %c0_55] : memref<32x32xf32, #tpu.memory_space<vmem>>, vector<32x32xf32>
    %160 = vector.extract_strided_slice %158 {offsets = [0, 0], sizes = [32, 32], strides = [1, 1]} : vector<64x32xf32> to vector<32x32xf32>
    %cst_56 = arith.constant dense<0.000000e+00> : vector<32x32xf32>
    %161 = tpu.matmul %159, %160, %cst_56 {dimension_numbers = #tpu.dot_dimension_numbers<[1], [0], [0], [1], [0, 0, 1, 1], [], []>} : vector<32x32xf32>, vector<32x32xf32>, vector<32x32xf32> -> vector<32x32xf32>
    %c0_57 = arith.constant 0 : index
    %c0_58 = arith.constant 0 : index
    %162 = vector.load %arg12[%c0_57, %c0_58] : memref<32x32xf32, #tpu.memory_space<vmem>>, vector<32x32xf32>
    %163 = vector.extract_strided_slice %158 {offsets = [32, 0], sizes = [32, 32], strides = [1, 1]} : vector<64x32xf32> to vector<32x32xf32>
    %cst_59 = arith.constant dense<0.000000e+00> : vector<32x32xf32>
    %164 = tpu.matmul %162, %163, %cst_59 {dimension_numbers = #tpu.dot_dimension_numbers<[1], [0], [0], [1], [0, 0, 1, 1], [], []>} : vector<32x32xf32>, vector<32x32xf32>, vector<32x32xf32> -> vector<32x32xf32>
    %165 = arith.addf %161, %164 : vector<32x32xf32>
    %c0_60 = arith.constant 0 : index
    %c0_61 = arith.constant 0 : index
    %166 = vector.load %arg6[%c0_60, %c0_61] : memref<1x32xf32, #tpu.memory_space<vmem>>, vector<1x32xf32>
    %167 = vector.broadcast %166 : vector<1x32xf32> to vector<32x32xf32>
    %168 = arith.addf %165, %167 : vector<32x32xf32>
    %c0_62 = arith.constant 0 : index
    %c0_63 = arith.constant 0 : index
    %169 = vector.load %arg7[%c0_62, %c0_63] : memref<32x4xf32, #tpu.memory_space<vmem>>, vector<32x4xf32>
    %cst_64 = arith.constant dense<0.000000e+00> : vector<32x4xf32>
    %170 = tpu.matmul %168, %169, %cst_64 {dimension_numbers = #tpu.dot_dimension_numbers<[1], [0], [0], [1], [0, 0, 1, 1], [], []>} : vector<32x32xf32>, vector<32x4xf32>, vector<32x4xf32> -> vector<32x4xf32>
    %c0_65 = arith.constant 0 : index
    %c0_66 = arith.constant 0 : index
    %171 = vector.load %arg8[%c0_65, %c0_66] : memref<1x4xf32, #tpu.memory_space<vmem>>, vector<1x4xf32>
    %172 = vector.broadcast %171 : vector<1x4xf32> to vector<32x4xf32>
    %173 = arith.addf %170, %172 : vector<32x4xf32>
    %c0_67 = arith.constant 0 : index
    %c0_68 = arith.constant 0 : index
    %174 = vector.load %arg9[%c0_67, %c0_68] : memref<32x4xf32, #tpu.memory_space<vmem>>, vector<32x4xf32>
    tpu.vector_store %arg9[%c0_67, %c0_68], %173 {strides = array<i32>} : memref<32x4xf32, #tpu.memory_space<vmem>>, vector<32x4xf32>,
    return
  }
  func.func @transform_0(%arg0: i32) -> (i32, i32) {
    %c0_i32 = arith.constant 0 : i32
    %c0_i32_0 = arith.constant 0 : i32
    %c0_i32_1 = arith.constant 0 : i32
    return %c0_i32, %c0_i32_0 : i32, i32
  }
  func.func @transform_1(%arg0: i32) -> (i32, i32) {
    %c0_i32 = arith.constant 0 : i32
    %c0_i32_0 = arith.constant 0 : i32
    %c0_i32_1 = arith.constant 0 : i32
    return %c0_i32, %c0_i32_0 : i32, i32
  }
  func.func @transform_2(%arg0: i32) -> (i32, i32) {
    %c0_i32 = arith.constant 0 : i32
    %c0_i32_0 = arith.constant 0 : i32
    %c0_i32_1 = arith.constant 0 : i32
    return %c0_i32, %c0_i32_0 : i32, i32
  }
  func.func @transform_3(%arg0: i32) -> (i32, i32) {
    %c0_i32 = arith.constant 0 : i32
    %c0_i32_0 = arith.constant 0 : i32
    %c0_i32_1 = arith.constant 0 : i32
    return %c0_i32, %c0_i32_0 : i32, i32
  }
  func.func @transform_4(%arg0: i32) -> (i32, i32) {
    %c0_i32 = arith.constant 0 : i32
    %c0_i32_0 = arith.constant 0 : i32
    %c0_i32_1 = arith.constant 0 : i32
    return %c0_i32, %c0_i32_0 : i32, i32
  }
  func.func @transform_5(%arg0: i32) -> (i32, i32) {
    %c0_i32 = arith.constant 0 : i32
    %c0_i32_0 = arith.constant 0 : i32
    %c0_i32_1 = arith.constant 0 : i32
    return %c0_i32, %c0_i32_0 : i32, i32
  }
  func.func @transform_6(%arg0: i32) -> (i32, i32) {
    %c0_i32 = arith.constant 0 : i32
    %c0_i32_0 = arith.constant 0 : i32
    %c0_i32_1 = arith.constant 0 : i32
    return %c0_i32, %c0_i32_0 : i32, i32
  }
  func.func @transform_7(%arg0: i32) -> (i32, i32) {
    %c0_i32 = arith.constant 0 : i32
    %c0_i32_0 = arith.constant 0 : i32
    %c0_i32_1 = arith.constant 0 : i32
    return %c0_i32, %c0_i32_0 : i32, i32
  }
  func.func @transform_8(%arg0: i32) -> (i32, i32) {
    %c0_i32 = arith.constant 0 : i32
    %c0_i32_0 = arith.constant 0 : i32
    %c0_i32_1 = arith.constant 0 : i32
    return %c0_i32, %c0_i32_0 : i32, i32
  }
}

</mosaic_0001>

<llo_original>
// kernel: tpu_custom_call.1
$region0: #{tpu_custom_call.1}
  #allocation0 [shape = 'u32[]', space=smem, size = 0x4, offset = 0x4, fixed_abs, tag = 'smem constant byte address 0x4 - core index']
  #allocation1 [shape = 'u32[144,128]{1,0:T(1,128)}', space=vmem, size = 0x12000, scoped, tag = 'internal scratch']
  #allocation2 [shape = 'f32[32,256]{1,0:T(8,128)}', space=vmem, size = 0x8000, scoped, tag = 'scratch operand']
  #allocation3 [shape = 'f32[32,32]{1,0:T(8,128)}', space=vmem, size = 0x4000, scoped, tag = 'scratch operand']
  #allocation4 [shape = 'f32[32,32]{1,0:T(8,128)}', space=vmem, size = 0x4000, scoped, tag = 'scratch operand']
  %s0 = inlined_call_operand.vmem [shape: f32[32,8], index: 0, kind: input, shape index: {}]
  %s1 = inlined_call_operand.vmem [shape: f32[8,256], index: 1, kind: input, shape index: {}]
  %s2 = inlined_call_operand.vmem [shape: f32[1,256], index: 2, kind: input, shape index: {}]
  %s3 = inlined_call_operand.vmem [shape: f32[64,256], index: 3, kind: input, shape index: {}]
  %s4 = inlined_call_operand.vmem [shape: f32[64,32], index: 4, kind: input, shape index: {}]
  %s5 = inlined_call_operand.vmem [shape: f32[1,32], index: 5, kind: input, shape index: {}]
  %s6 = inlined_call_operand.vmem [shape: f32[32,4], index: 6, kind: input, shape index: {}]
  %s7 = inlined_call_operand.vmem [shape: f32[1,4], index: 7, kind: input, shape index: {}]
  %s8 = inlined_call_operand.vmem [shape: f32[32,4], index: 8, kind: output, shape index: {}]
  %s9 = sld [smem:[#allocation0]]
  $region42: #{tpu_custom_call.1} parent=0
    _
  %s11 = ssub.s32 1, %s9
  %s12 = scalar_select 0, %s11, %s9
  // Predicated region
  $region2: #{tpu_custom_call.1} parent=0 // pred_check
    _
  $region3: #{tpu_custom_call.1} parent=0 // pred_check_branch
    %14 = sbr.rel (0) target = $region5
  $region4: #{tpu_custom_call.1} parent=0 // pred_region
    _
  $region5: #{tpu_custom_call.1} parent=0 // pred_fallthru
    _
  // Predicated region
  $region6: #{tpu_custom_call.1} parent=0 // pred_check
    _
  $region7: #{tpu_custom_call.1} parent=0 // pred_check_branch
    %16 = sbr.rel (0) target = $region9
  $region8: #{tpu_custom_call.1} parent=0 // pred_region
    _
  $region9: #{tpu_custom_call.1} parent=0 // pred_fallthru
    _
  // Predicated region
  $region10: #{tpu_custom_call.1} parent=0 // pred_check
    _
  $region11: #{tpu_custom_call.1} parent=0 // pred_check_branch
    %18 = sbr.rel (0) target = $region13
  $region12: #{tpu_custom_call.1} parent=0 // pred_region
    _
  $region13: #{tpu_custom_call.1} parent=0 // pred_fallthru
    _
  // Predicated region
  $region14: #{tpu_custom_call.1} parent=0 // pred_check
    _
  $region15: #{tpu_custom_call.1} parent=0 // pred_check_branch
    %20 = sbr.rel (0) target = $region17
  $region16: #{tpu_custom_call.1} parent=0 // pred_region
    _
  $region17: #{tpu_custom_call.1} parent=0 // pred_fallthru
    _
  // Predicated region
  $region18: #{tpu_custom_call.1} parent=0 // pred_check
    _
  $region19: #{tpu_custom_call.1} parent=0 // pred_check_branch
    %22 = sbr.rel (0) target = $region21
  $region20: #{tpu_custom_call.1} parent=0 // pred_region
    _
  $region21: #{tpu_custom_call.1} parent=0 // pred_fallthru
    _
  // Predicated region
  $region22: #{tpu_custom_call.1} parent=0 // pred_check
    _
  $region23: #{tpu_custom_call.1} parent=0 // pred_check_branch
    %24 = sbr.rel (0) target = $region25
  $region24: #{tpu_custom_call.1} parent=0 // pred_region
    _
  $region25: #{tpu_custom_call.1} parent=0 // pred_fallthru
    _
  // Predicated region
  $region26: #{tpu_custom_call.1} parent=0 // pred_check
    _
  $region27: #{tpu_custom_call.1} parent=0 // pred_check_branch
    %26 = sbr.rel (0) target = $region29
  $region28: #{tpu_custom_call.1} parent=0 // pred_region
    _
  $region29: #{tpu_custom_call.1} parent=0 // pred_fallthru
    _
  // Predicated region
  $region30: #{tpu_custom_call.1} parent=0 // pred_check
    _
  $region31: #{tpu_custom_call.1} parent=0 // pred_check_branch
    %28 = sbr.rel (0) target = $region33
  $region32: #{tpu_custom_call.1} parent=0 // pred_region
    _
  $region33: #{tpu_custom_call.1} parent=0 // pred_fallthru
    _
  %v29 = vld [vmem:[%s0] sm:$0xff]
  %v30 = vld [vmem:[%s0 + $0x8] sm:$0xff]
  %v31 = vld [vmem:[%s0 + $0x10] sm:$0xff]
  %v32 = vld [vmem:[%s0 + $0x18] sm:$0xff]
  %v33 = vld [vmem:[%s1] sm:$0xff]
  %v34 = vld [vmem:[%s1 + $0x8] sm:$0xff]
  %v35 = vld [vmem:[%s2] sm:$0x3]
  %v37 = vlaneseq
  %v38 = vshrl.u32 %v37, 7
  %v39 = vsub.s32 0, %v38
  %v40 = vrot.slane %v35, %v39
  %v41 = vlaneseq
  %v42 = vshrl.u32 %v41, 7
  %v43 = vsub.s32 1, %v42
  %v44 = vrot.slane %v35, %v43
  %vm47 = vcmask 64512
  %v49 = vsel %vm47, %v29, 0
  %v52 = vsel %vm47, %v30, 0
  %v55 = vsel %vm47, %v31, 0
  %v58 = vsel %vm47, %v32, 0
  %60 = vmatprep.subr.mxu0 %v34
  %61 = vmatpush1.msra.mxu0 %v33
  %62 = vmatprep.subr.mxu0 0.0
  %63 = vmatpush1.msra.mxu0 0.0
  %64 = vmatprep.subr.mxu0 0.0
  %65 = vmatpush1.msra.mxu0 0.0
  %66 = vmatprep.subr.mxu0 0.0
  %67 = vmatpush1.msra.mxu0 0.0
  %68 = vmatprep.subr.mxu0 0.0
  %69 = vmatpush1.msra.mxu0 0.0
  %70 = vmatprep.subr.mxu0 0.0
  %71 = vmatpush1.msra.mxu0 0.0
  %72 = vmatprep.subr.mxu0 0.0
  %73 = vmatpush1.msra.mxu0 0.0
  %74 = vmatprep.subr.mxu0 0.0
  %75 = vmatpush1.msra.mxu0 0.0
  %76 = vmatprep.subr.mxu0 0.0
  %77 = vmatpush1.msra.mxu0 0.0
  %78 = vmatprep.subr.mxu0 0.0
  %79 = vmatpush1.msra.mxu0 0.0
  %80 = vmatprep.subr.mxu0 0.0
  %81 = vmatpush1.msra.mxu0 0.0
  %82 = vmatprep.subr.mxu0 0.0
  %83 = vmatpush1.msra.mxu0 0.0
  %84 = vmatprep.subr.mxu0 0.0
  %85 = vmatpush1.msra.mxu0 0.0
  %86 = vmatprep.subr.mxu0 0.0
  %87 = vmatpush1.msra.mxu0 0.0
  %88 = vmatprep.subr.mxu0 0.0
  %89 = vmatpush1.msra.mxu0 0.0
  %90 = vmatprep.subr.mxu0 0.0
  %91 = vmatpush1.msra.mxu0 0.0
  %92 = vmatprep.subr.mxu0 0.0
  %93 = vmatpush1.msra.mxu0 0.0
  %94 = vmatprep.subr.mxu0 0.0
  %95 = vmatpush1.msra.mxu0 0.0
  %96 = vmatprep.subr.mxu0 0.0
  %97 = vmatpush1.msra.mxu0 0.0
  %98 = vmatprep.subr.mxu0 0.0
  %99 = vmatpush1.msra.mxu0 0.0
  %100 = vmatprep.subr.mxu0 0.0
  %101 = vmatpush1.msra.mxu0 0.0
  %102 = vmatprep.subr.mxu0 0.0
  %103 = vmatpush1.msra.mxu0 0.0
  %104 = vmatprep.subr.mxu0 0.0
  %105 = vmatpush1.msra.mxu0 0.0
  %106 = vmatprep.subr.mxu0 0.0
  %107 = vmatpush1.msra.mxu0 0.0
  %108 = vmatprep.subr.mxu0 0.0
  %109 = vmatpush1.msra.mxu0 0.0
  %110 = vmatprep.subr.mxu0 0.0
  %111 = vmatpush1.msra.mxu0 0.0
  %112 = vmatprep.subr.mxu0 0.0
  %113 = vmatpush1.msra.mxu0 0.0
  %114 = vmatprep.subr.mxu0 0.0
  %115 = vmatpush1.msra.mxu0 0.0
  %116 = vmatprep.subr.mxu0 0.0
  %117 = vmatpush1.msra.mxu0 0.0
  %118 = vmatprep.subr.mxu0 0.0
  %119 = vmatpush1.msra.mxu0 0.0
  %120 = vmatprep.subr.mxu0 0.0
  %121 = vmatpush1.msra.mxu0 0.0
  %122 = vmatprep.subr.mxu0 0.0
  %123 = vmatpush1.msra.mxu0 0.0
  %124 = vmatprep.mubr.f32.mxu0 0.0
  %125 = vmatmul.mubr.f32.gmra.mrb[0].mxu0 %v49
  %v126 = vpop.f32.mrb[0].mxu0
  %v127 = vadd.f32 %v40, %v126
  %v128 = vpop.f32.mrb[0].mxu0
  %v129 = vadd.f32 %v44, %v128
  %130 = vmatprep.mubr.f32.mxu0 0.0
  %131 = vmatmul.mubr.f32.gmra.mrb[0].mxu0 %v52
  %v132 = vpop.f32.mrb[0].mxu0
  %v133 = vadd.f32 %v40, %v132
  %v134 = vpop.f32.mrb[0].mxu0
  %v135 = vadd.f32 %v44, %v134
  %136 = vmatprep.mubr.f32.mxu0 0.0
  %137 = vmatmul.mubr.f32.gmra.mrb[0].mxu0 %v55
  %v138 = vpop.f32.mrb[0].mxu0
  %v139 = vadd.f32 %v40, %v138
  %v140 = vpop.f32.mrb[0].mxu0
  %v141 = vadd.f32 %v44, %v140
  %142 = vmatprep.mubr.f32.mxu0 0.0
  %143 = vmatmul.mubr.f32.gmra.mrb[0].mxu0 %v58
  %v144 = vpop.f32.mrb[0].mxu0
  %v145 = vadd.f32 %v40, %v144
  %v146 = vpop.f32.mrb[0].mxu0
  %v147 = vadd.f32 %v44, %v146
  %148 = vdwg.mxu0
  %149 = vst [vmem:[#allocation2] sm:$0xff] %v127
  %150 = vst [vmem:[#allocation2 + $0x8] sm:$0xff] %v129
  %151 = vst [vmem:[#allocation2 + $0x10] sm:$0xff] %v133
  %152 = vst [vmem:[#allocation2 + $0x18] sm:$0xff] %v135
  %153 = vst [vmem:[#allocation2 + $0x20] sm:$0xff] %v139
  %154 = vst [vmem:[#allocation2 + $0x28] sm:$0xff] %v141
  %155 = vst [vmem:[#allocation2 + $0x30] sm:$0xff] %v145
  %156 = vst [vmem:[#allocation2 + $0x38] sm:$0xff] %v147
  %v157 = vld [vmem:[#allocation2] sm:$0xff]
  %v158 = vxor.u32 %v157, 2147483648
  %v159 = vmul.f32 %v158, 1.442695
  %v160 = vpow.pop %v159
  %v161 = vadd.f32 %v160, 1.0
  %v162 = vrcp.pop %v161
  %v163 = vmul.f32 1.0, %v162
  %v164 = vtanh.pop %v157
  %166 = vrot.lane.b32.xlu0 %v164, 64
  %v167 = vpop.permute.xlu0 %166
  %v169 = vmul.f32 %v163, %v167
  %v170 = vtanh.pop %v169
  %172 = vrot.lane.b32.xlu0 %v170, 96
  %v173 = vpop.permute.xlu0 %172
  %v175 = vmul.f32 %v163, %v173
  %v176 = vld [vmem:[#allocation2 + $0x38] sm:$0xff]
  %v177 = vxor.u32 %v176, 2147483648
  %v178 = vmul.f32 %v177, 1.442695
  %v179 = vpow.pop %v178
  %v180 = vadd.f32 %v179, 1.0
  %v181 = vrcp.pop %v180
  %v182 = vmul.f32 1.0, %v181
  %v183 = vtanh.pop %v176
  %185 = vrot.lane.b32.xlu0 %v183, 64
  %v186 = vpop.permute.xlu0 %185
  %v188 = vmul.f32 %v182, %v186
  %v189 = vtanh.pop %v188
  %191 = vrot.lane.b32.xlu0 %v189, 96
  %v192 = vpop.permute.xlu0 %191
  %v194 = vmul.f32 %v182, %v192
  %196 = vrot.lane.b32.xlu0 %v175, 32
  %v197 = vpop.permute.xlu0 %196
  %vm199 = vcmask 261120
  %200 = vst.msk [vmem:[#allocation3] sm:$0xff] %vm199, %v197
  %202 = vrot.lane.b32.xlu0 %v194, 32
  %v203 = vpop.permute.xlu0 %202
  %205 = vst.msk [vmem:[#allocation4 + $0x18] sm:$0xff] %vm199, %v203
  %206 = vrot.lane.b32.xlu0 %v194, 64
  %v207 = vpop.permute.xlu0 %206
  %v209 = vsel %vm199, %v197, %v207
  %v210 = vld [vmem:[%s3] sm:$0xff]
  %v211 = vld [vmem:[%s3 + $0x8] sm:$0xff]
  %v212 = vld [vmem:[%s3 + $0x10] sm:$0xff]
  %v213 = vld [vmem:[%s3 + $0x18] sm:$0xff]
  %v214 = vld [vmem:[%s3 + $0x20] sm:$0xff]
  %v215 = vld [vmem:[%s3 + $0x28] sm:$0xff]
  %v216 = vld [vmem:[%s3 + $0x30] sm:$0xff]
  %v217 = vld [vmem:[%s3 + $0x38] sm:$0xff]
  %v218 = vld [vmem:[%s3 + $0x40] sm:$0xff]
  %v219 = vld [vmem:[%s3 + $0x48] sm:$0xff]
  %v220 = vld [vmem:[%s3 + $0x50] sm:$0xff]
  %v221 = vld [vmem:[%s3 + $0x58] sm:$0xff]
  %v222 = vld [vmem:[%s3 + $0x60] sm:$0xff]
  %v223 = vld [vmem:[%s3 + $0x68] sm:$0xff]
  %v224 = vld [vmem:[%s3 + $0x70] sm:$0xff]
  %v225 = vld [vmem:[%s3 + $0x78] sm:$0xff]
  %vm226 = vcmask 523264
  %v228 = vsel %vm226, %v209, 0
  %230 = vmatprep.subr.mxu0 %v211
  %231 = vmatpush1.msra.mxu0 %v210
  %232 = vmatprep.subr.mxu0 %v213
  %233 = vmatpush1.msra.mxu0 %v212
  %234 = vmatprep.subr.mxu0 %v215
  %235 = vmatpush1.msra.mxu0 %v214
  %236 = vmatprep.subr.mxu0 %v217
  %237 = vmatpush1.msra.mxu0 %v216
  %238 = vmatprep.subr.mxu0 %v219
  %239 = vmatpush1.msra.mxu0 %v218
  %240 = vmatprep.subr.mxu0 %v221
  %241 = vmatpush1.msra.mxu0 %v220
  %242 = vmatprep.subr.mxu0 %v223
  %243 = vmatpush1.msra.mxu0 %v222
  %244 = vmatprep.subr.mxu0 %v225
  %245 = vmatpush1.msra.mxu0 %v224
  %246 = vmatprep.subr.mxu0 0.0
  %247 = vmatpush1.msra.mxu0 0.0
  %248 = vmatprep.subr.mxu0 0.0
  %249 = vmatpush1.msra.mxu0 0.0
  %250 = vmatprep.subr.mxu0 0.0
  %251 = vmatpush1.msra.mxu0 0.0
  %252 = vmatprep.subr.mxu0 0.0
  %253 = vmatpush1.msra.mxu0 0.0
  %254 = vmatprep.subr.mxu0 0.0
  %255 = vmatpush1.msra.mxu0 0.0
  %256 = vmatprep.subr.mxu0 0.0
  %257 = vmatpush1.msra.mxu0 0.0
  %258 = vmatprep.subr.mxu0 0.0
  %259 = vmatpush1.msra.mxu0 0.0
  %260 = vmatprep.subr.mxu0 0.0
  %261 = vmatpush1.msra.mxu0 0.0
  %262 = vmatprep.subr.mxu0 0.0
  %263 = vmatpush1.msra.mxu0 0.0
  %264 = vmatprep.subr.mxu0 0.0
  %265 = vmatpush1.msra.mxu0 0.0
  %266 = vmatprep.subr.mxu0 0.0
  %267 = vmatpush1.msra.mxu0 0.0
  %268 = vmatprep.subr.mxu0 0.0
  %269 = vmatpush1.msra.mxu0 0.0
  %270 = vmatprep.subr.mxu0 0.0
  %271 = vmatpush1.msra.mxu0 0.0
  %272 = vmatprep.subr.mxu0 0.0
  %273 = vmatpush1.msra.mxu0 0.0
  %274 = vmatprep.subr.mxu0 0.0
  %275 = vmatpush1.msra.mxu0 0.0
  %276 = vmatprep.subr.mxu0 0.0
  %277 = vmatpush1.msra.mxu0 0.0
  %278 = vmatprep.subr.mxu0 0.0
  %279 = vmatpush1.msra.mxu0 0.0
  %280 = vmatprep.subr.mxu0 0.0
  %281 = vmatpush1.msra.mxu0 0.0
  %282 = vmatprep.subr.mxu0 0.0
  %283 = vmatpush1.msra.mxu0 0.0
  %284 = vmatprep.subr.mxu0 0.0
  %285 = vmatpush1.msra.mxu0 0.0
  %286 = vmatprep.subr.mxu0 0.0
  %287 = vmatpush1.msra.mxu0 0.0
  %288 = vmatprep.subr.mxu0 0.0
  %289 = vmatpush1.msra.mxu0 0.0
  %290 = vmatprep.subr.mxu0 0.0
  %291 = vmatpush1.msra.mxu0 0.0
  %292 = vmatprep.subr.mxu0 0.0
  %293 = vmatpush1.msra.mxu0 0.0
  %294 = vmatprep.mubr.f32.mxu0 0.0
  %295 = vmatmul.mubr.f32.gmra.mrb[0].mxu0 %v228
  %v296 = vpop.f32.mrb[0].mxu0
  %v297 = vadd.f32 0.0, %v296
  %v298 = vpop.f32.mrb[0].mxu0
  %v299 = vadd.f32 0.0, %v298
  %300 = vdwg.mxu0
  %v301 = vld [vmem:[#allocation2 + $0x10] sm:$0xff]
  %v302 = vadd.f32 %v297, %v301
  %v303 = vld [vmem:[#allocation2 + $0x28] sm:$0xff]
  %v304 = vadd.f32 %v299, %v303
  %v305 = vxor.u32 %v302, 2147483648
  %v306 = vmul.f32 %v305, 1.442695
  %v307 = vpow.pop %v306
  %v308 = vadd.f32 %v307, 1.0
  %v309 = vrcp.pop %v308
  %v310 = vmul.f32 1.0, %v309
  %v311 = vtanh.pop %v302
  %313 = vrot.lane.b32.xlu0 %v169, 32
  %v314 = vpop.permute.xlu0 %313
  %v316 = vmul.f32 %v310, %v314
  %318 = vrot.lane.b32.xlu0 %v311, 64
  %v319 = vpop.permute.xlu0 %318
  %v321 = vmul.f32 %v310, %v319
  %323 = vrot.lane.b32.xlu0 %v321, 32
  %v324 = vpop.permute.xlu0 %323
  %v326 = vadd.f32 %v316, %v324
  %v327 = vtanh.pop %v326
  %329 = vrot.lane.b32.xlu0 %v327, 64
  %v330 = vpop.permute.xlu0 %329
  %v332 = vmul.f32 %v310, %v330
  %v333 = vxor.u32 %v304, 2147483648
  %v334 = vmul.f32 %v333, 1.442695
  %v335 = vpow.pop %v334
  %v336 = vadd.f32 %v335, 1.0
  %v337 = vrcp.pop %v336
  %v338 = vmul.f32 1.0, %v337
  %v339 = vtanh.pop %v304
  %341 = vrot.lane.b32.xlu0 %v188, 32
  %v342 = vpop.permute.xlu0 %341
  %v344 = vmul.f32 %v338, %v342
  %346 = vrot.lane.b32.xlu0 %v339, 64
  %v347 = vpop.permute.xlu0 %346
  %v349 = vmul.f32 %v338, %v347
  %351 = vrot.lane.b32.xlu0 %v349, 32
  %v352 = vpop.permute.xlu0 %351
  %v354 = vadd.f32 %v344, %v352
  %v355 = vtanh.pop %v354
  %357 = vrot.lane.b32.xlu0 %v355, 64
  %v358 = vpop.permute.xlu0 %357
  %v360 = vmul.f32 %v338, %v358
  %362 = vrot.lane.b32.xlu0 %v332, 32
  %v363 = vpop.permute.xlu0 %362
  %365 = vst.msk [vmem:[#allocation3 + $0x8] sm:$0xff] %vm199, %v363
  %367 = vrot.lane.b32.xlu0 %v360, 32
  %v368 = vpop.permute.xlu0 %367
  %370 = vst.msk [vmem:[#allocation4 + $0x10] sm:$0xff] %vm199, %v368
  %371 = vrot.lane.b32.xlu0 %v360, 64
  %v372 = vpop.permute.xlu0 %371
  %v374 = vsel %vm199, %v363, %v372
  %v375 = vld [vmem:[%s3] sm:$0xff]
  %v376 = vld [vmem:[%s3 + $0x8] sm:$0xff]
  %v377 = vld [vmem:[%s3 + $0x10] sm:$0xff]
  %v378 = vld [vmem:[%s3 + $0x18] sm:$0xff]
  %v379 = vld [vmem:[%s3 + $0x20] sm:$0xff]
  %v380 = vld [vmem:[%s3 + $0x28] sm:$0xff]
  %v381 = vld [vmem:[%s3 + $0x30] sm:$0xff]
  %v382 = vld [vmem:[%s3 + $0x38] sm:$0xff]
  %v383 = vld [vmem:[%s3 + $0x40] sm:$0xff]
  %v384 = vld [vmem:[%s3 + $0x48] sm:$0xff]
  %v385 = vld [vmem:[%s3 + $0x50] sm:$0xff]
  %v386 = vld [vmem:[%s3 + $0x58] sm:$0xff]
  %v387 = vld [vmem:[%s3 + $0x60] sm:$0xff]
  %v388 = vld [vmem:[%s3 + $0x68] sm:$0xff]
  %v389 = vld [vmem:[%s3 + $0x70] sm:$0xff]
  %v390 = vld [vmem:[%s3 + $0x78] sm:$0xff]
  %v392 = vsel %vm226, %v374, 0
  %394 = vmatprep.subr.mxu0 %v376
  %395 = vmatpush1.msra.mxu0 %v375
  %396 = vmatprep.subr.mxu0 %v378
  %397 = vmatpush1.msra.mxu0 %v377
  %398 = vmatprep.subr.mxu0 %v380
  %399 = vmatpush1.msra.mxu0 %v379
  %400 = vmatprep.subr.mxu0 %v382
  %401 = vmatpush1.msra.mxu0 %v381
  %402 = vmatprep.subr.mxu0 %v384
  %403 = vmatpush1.msra.mxu0 %v383
  %404 = vmatprep.subr.mxu0 %v386
  %405 = vmatpush1.msra.mxu0 %v385
  %406 = vmatprep.subr.mxu0 %v388
  %407 = vmatpush1.msra.mxu0 %v387
  %408 = vmatprep.subr.mxu0 %v390
  %409 = vmatpush1.msra.mxu0 %v389
  %410 = vmatprep.subr.mxu0 0.0
  %411 = vmatpush1.msra.mxu0 0.0
  %412 = vmatprep.subr.mxu0 0.0
  %413 = vmatpush1.msra.mxu0 0.0
  %414 = vmatprep.subr.mxu0 0.0
  %415 = vmatpush1.msra.mxu0 0.0
  %416 = vmatprep.subr.mxu0 0.0
  %417 = vmatpush1.msra.mxu0 0.0
  %418 = vmatprep.subr.mxu0 0.0
  %419 = vmatpush1.msra.mxu0 0.0
  %420 = vmatprep.subr.mxu0 0.0
  %421 = vmatpush1.msra.mxu0 0.0
  %422 = vmatprep.subr.mxu0 0.0
  %423 = vmatpush1.msra.mxu0 0.0
  %424 = vmatprep.subr.mxu0 0.0
  %425 = vmatpush1.msra.mxu0 0.0
  %426 = vmatprep.subr.mxu0 0.0
  %427 = vmatpush1.msra.mxu0 0.0
  %428 = vmatprep.subr.mxu0 0.0
  %429 = vmatpush1.msra.mxu0 0.0
  %430 = vmatprep.subr.mxu0 0.0
  %431 = vmatpush1.msra.mxu0 0.0
  %432 = vmatprep.subr.mxu0 0.0
  %433 = vmatpush1.msra.mxu0 0.0
  %434 = vmatprep.subr.mxu0 0.0
  %435 = vmatpush1.msra.mxu0 0.0
  %436 = vmatprep.subr.mxu0 0.0
  %437 = vmatpush1.msra.mxu0 0.0
  %438 = vmatprep.subr.mxu0 0.0
  %439 = vmatpush1.msra.mxu0 0.0
  %440 = vmatprep.subr.mxu0 0.0
  %441 = vmatpush1.msra.mxu0 0.0
  %442 = vmatprep.subr.mxu0 0.0
  %443 = vmatpush1.msra.mxu0 0.0
  %444 = vmatprep.subr.mxu0 0.0
  %445 = vmatpush1.msra.mxu0 0.0
  %446 = vmatprep.subr.mxu0 0.0
  %447 = vmatpush1.msra.mxu0 0.0
  %448 = vmatprep.subr.mxu0 0.0
  %449 = vmatpush1.msra.mxu0 0.0
  %450 = vmatprep.subr.mxu0 0.0
  %451 = vmatpush1.msra.mxu0 0.0
  %452 = vmatprep.subr.mxu0 0.0
  %453 = vmatpush1.msra.mxu0 0.0
  %454 = vmatprep.subr.mxu0 0.0
  %455 = vmatpush1.msra.mxu0 0.0
  %456 = vmatprep.subr.mxu0 0.0
  %457 = vmatpush1.msra.mxu0 0.0
  %458 = vmatprep.mubr.f32.mxu0 0.0
  %459 = vmatmul.mubr.f32.gmra.mrb[0].mxu0 %v392
  %v460 = vpop.f32.mrb[0].mxu0
  %v461 = vadd.f32 0.0, %v460
  %v462 = vpop.f32.mrb[0].mxu0
  %v463 = vadd.f32 0.0, %v462
  %464 = vdwg.mxu0
  %v465 = vld [vmem:[#allocation2 + $0x20] sm:$0xff]
  %v466 = vadd.f32 %v461, %v465
  %v467 = vld [vmem:[#allocation2 + $0x18] sm:$0xff]
  %v468 = vadd.f32 %v463, %v467
  %v469 = vxor.u32 %v466, 2147483648
  %v470 = vmul.f32 %v469, 1.442695
  %v471 = vpow.pop %v470
  %v472 = vadd.f32 %v471, 1.0
  %v473 = vrcp.pop %v472
  %v474 = vmul.f32 1.0, %v473
  %v475 = vtanh.pop %v466
  %v476 = vmul.f32 %v474, %v326
  %478 = vrot.lane.b32.xlu0 %v475, 64
  %v479 = vpop.permute.xlu0 %478
  %v481 = vmul.f32 %v474, %v479
  %483 = vrot.lane.b32.xlu0 %v481, 32
  %v484 = vpop.permute.xlu0 %483
  %v486 = vadd.f32 %v476, %v484
  %v487 = vtanh.pop %v486
  %489 = vrot.lane.b32.xlu0 %v487, 64
  %v490 = vpop.permute.xlu0 %489
  %v492 = vmul.f32 %v474, %v490
  %v493 = vxor.u32 %v468, 2147483648
  %v494 = vmul.f32 %v493, 1.442695
  %v495 = vpow.pop %v494
  %v496 = vadd.f32 %v495, 1.0
  %v497 = vrcp.pop %v496
  %v498 = vmul.f32 1.0, %v497
  %v499 = vtanh.pop %v468
  %v500 = vmul.f32 %v498, %v354
  %502 = vrot.lane.b32.xlu0 %v499, 64
  %v503 = vpop.permute.xlu0 %502
  %v505 = vmul.f32 %v498, %v503
  %507 = vrot.lane.b32.xlu0 %v505, 32
  %v508 = vpop.permute.xlu0 %507
  %v510 = vadd.f32 %v500, %v508
  %v511 = vtanh.pop %v510
  %513 = vrot.lane.b32.xlu0 %v511, 64
  %v514 = vpop.permute.xlu0 %513
  %v516 = vmul.f32 %v498, %v514
  %518 = vrot.lane.b32.xlu0 %v492, 32
  %v519 = vpop.permute.xlu0 %518
  %521 = vst.msk [vmem:[#allocation3 + $0x10] sm:$0xff] %vm199, %v519
  %523 = vrot.lane.b32.xlu0 %v516, 32
  %v524 = vpop.permute.xlu0 %523
  %526 = vst.msk [vmem:[#allocation4 + $0x8] sm:$0xff] %vm199, %v524
  %527 = vrot.lane.b32.xlu0 %v516, 64
  %v528 = vpop.permute.xlu0 %527
  %v530 = vsel %vm199, %v519, %v528
  %v531 = vld [vmem:[%s3] sm:$0xff]
  %v532 = vld [vmem:[%s3 + $0x8] sm:$0xff]
  %v533 = vld [vmem:[%s3 + $0x10] sm:$0xff]
  %v534 = vld [vmem:[%s3 + $0x18] sm:$0xff]
  %v535 = vld [vmem:[%s3 + $0x20] sm:$0xff]
  %v536 = vld [vmem:[%s3 + $0x28] sm:$0xff]
  %v537 = vld [vmem:[%s3 + $0x30] sm:$0xff]
  %v538 = vld [vmem:[%s3 + $0x38] sm:$0xff]
  %v539 = vld [vmem:[%s3 + $0x40] sm:$0xff]
  %v540 = vld [vmem:[%s3 + $0x48] sm:$0xff]
  %v541 = vld [vmem:[%s3 + $0x50] sm:$0xff]
  %v542 = vld [vmem:[%s3 + $0x58] sm:$0xff]
  %v543 = vld [vmem:[%s3 + $0x60] sm:$0xff]
  %v544 = vld [vmem:[%s3 + $0x68] sm:$0xff]
  %v545 = vld [vmem:[%s3 + $0x70] sm:$0xff]
  %v546 = vld [vmem:[%s3 + $0x78] sm:$0xff]
  %v548 = vsel %vm226, %v530, 0
  %550 = vmatprep.subr.mxu0 %v532
  %551 = vmatpush1.msra.mxu0 %v531
  %552 = vmatprep.subr.mxu0 %v534
  %553 = vmatpush1.msra.mxu0 %v533
  %554 = vmatprep.subr.mxu0 %v536
  %555 = vmatpush1.msra.mxu0 %v535
  %556 = vmatprep.subr.mxu0 %v538
  %557 = vmatpush1.msra.mxu0 %v537
  %558 = vmatprep.subr.mxu0 %v540
  %559 = vmatpush1.msra.mxu0 %v539
  %560 = vmatprep.subr.mxu0 %v542
  %561 = vmatpush1.msra.mxu0 %v541
  %562 = vmatprep.subr.mxu0 %v544
  %563 = vmatpush1.msra.mxu0 %v543
  %564 = vmatprep.subr.mxu0 %v546
  %565 = vmatpush1.msra.mxu0 %v545
  %566 = vmatprep.subr.mxu0 0.0
  %567 = vmatpush1.msra.mxu0 0.0
  %568 = vmatprep.subr.mxu0 0.0
  %569 = vmatpush1.msra.mxu0 0.0
  %570 = vmatprep.subr.mxu0 0.0
  %571 = vmatpush1.msra.mxu0 0.0
  %572 = vmatprep.subr.mxu0 0.0
  %573 = vmatpush1.msra.mxu0 0.0
  %574 = vmatprep.subr.mxu0 0.0
  %575 = vmatpush1.msra.mxu0 0.0
  %576 = vmatprep.subr.mxu0 0.0
  %577 = vmatpush1.msra.mxu0 0.0
  %578 = vmatprep.subr.mxu0 0.0
  %579 = vmatpush1.msra.mxu0 0.0
  %580 = vmatprep.subr.mxu0 0.0
  %581 = vmatpush1.msra.mxu0 0.0
  %582 = vmatprep.subr.mxu0 0.0
  %583 = vmatpush1.msra.mxu0 0.0
  %584 = vmatprep.subr.mxu0 0.0
  %585 = vmatpush1.msra.mxu0 0.0
  %586 = vmatprep.subr.mxu0 0.0
  %587 = vmatpush1.msra.mxu0 0.0
  %588 = vmatprep.subr.mxu0 0.0
  %589 = vmatpush1.msra.mxu0 0.0
  %590 = vmatprep.subr.mxu0 0.0
  %591 = vmatpush1.msra.mxu0 0.0
  %592 = vmatprep.subr.mxu0 0.0
  %593 = vmatpush1.msra.mxu0 0.0
  %594 = vmatprep.subr.mxu0 0.0
  %595 = vmatpush1.msra.mxu0 0.0
  %596 = vmatprep.subr.mxu0 0.0
  %597 = vmatpush1.msra.mxu0 0.0
  %598 = vmatprep.subr.mxu0 0.0
  %599 = vmatpush1.msra.mxu0 0.0
  %600 = vmatprep.subr.mxu0 0.0
  %601 = vmatpush1.msra.mxu0 0.0
  %602 = vmatprep.subr.mxu0 0.0
  %603 = vmatpush1.msra.mxu0 0.0
  %604 = vmatprep.subr.mxu0 0.0
  %605 = vmatpush1.msra.mxu0 0.0
  %606 = vmatprep.subr.mxu0 0.0
  %607 = vmatpush1.msra.mxu0 0.0
  %608 = vmatprep.subr.mxu0 0.0
  %609 = vmatpush1.msra.mxu0 0.0
  %610 = vmatprep.subr.mxu0 0.0
  %611 = vmatpush1.msra.mxu0 0.0
  %612 = vmatprep.subr.mxu0 0.0
  %613 = vmatpush1.msra.mxu0 0.0
  %614 = vmatprep.mubr.f32.mxu0 0.0
  %615 = vmatmul.mubr.f32.gmra.mrb[0].mxu0 %v548
  %v616 = vpop.f32.mrb[0].mxu0
  %v617 = vadd.f32 0.0, %v616
  %v618 = vpop.f32.mrb[0].mxu0
  %v619 = vadd.f32 0.0, %v618
  %620 = vdwg.mxu0
  %v621 = vld [vmem:[#allocation2 + $0x30] sm:$0xff]
  %v622 = vadd.f32 %v617, %v621
  %v623 = vld [vmem:[#allocation2 + $0x8] sm:$0xff]
  %v624 = vadd.f32 %v619, %v623
  %v625 = vxor.u32 %v622, 2147483648
  %v626 = vmul.f32 %v625, 1.442695
  %v627 = vpow.pop %v626
  %v628 = vadd.f32 %v627, 1.0
  %v629 = vrcp.pop %v628
  %v630 = vmul.f32 1.0, %v629
  %v631 = vtanh.pop %v622
  %v632 = vmul.f32 %v630, %v486
  %634 = vrot.lane.b32.xlu0 %v631, 64
  %v635 = vpop.permute.xlu0 %634
  %v637 = vmul.f32 %v630, %v635
  %639 = vrot.lane.b32.xlu0 %v637, 32
  %v640 = vpop.permute.xlu0 %639
  %v642 = vadd.f32 %v632, %v640
  %v643 = vtanh.pop %v642
  %645 = vrot.lane.b32.xlu0 %v643, 64
  %v646 = vpop.permute.xlu0 %645
  %v648 = vmul.f32 %v630, %v646
  %v649 = vxor.u32 %v624, 2147483648
  %v650 = vmul.f32 %v649, 1.442695
  %v651 = vpow.pop %v650
  %v652 = vadd.f32 %v651, 1.0
  %v653 = vrcp.pop %v652
  %v654 = vmul.f32 1.0, %v653
  %v655 = vtanh.pop %v624
  %v656 = vmul.f32 %v654, %v510
  %658 = vrot.lane.b32.xlu0 %v655, 64
  %v659 = vpop.permute.xlu0 %658
  %v661 = vmul.f32 %v654, %v659
  %663 = vrot.lane.b32.xlu0 %v661, 32
  %v664 = vpop.permute.xlu0 %663
  %v666 = vadd.f32 %v656, %v664
  %v667 = vtanh.pop %v666
  %669 = vrot.lane.b32.xlu0 %v667, 64
  %v670 = vpop.permute.xlu0 %669
  %v672 = vmul.f32 %v654, %v670
  %674 = vrot.lane.b32.xlu0 %v648, 32
  %v675 = vpop.permute.xlu0 %674
  %677 = vst.msk [vmem:[#allocation3 + $0x18] sm:$0xff] %vm199, %v675
  %679 = vrot.lane.b32.xlu0 %v672, 32
  %v680 = vpop.permute.xlu0 %679
  %682 = vst.msk [vmem:[#allocation4] sm:$0xff] %vm199, %v680
  %v683 = vld [vmem:[%s4] sm:$0xff]
  %v684 = vld [vmem:[%s4 + $0x8] sm:$0xff]
  %v685 = vld [vmem:[%s4 + $0x10] sm:$0xff]
  %v686 = vld [vmem:[%s4 + $0x18] sm:$0xff]
  %v687 = vld [vmem:[%s4 + $0x20] sm:$0xff]
  %v688 = vld [vmem:[%s4 + $0x28] sm:$0xff]
  %v689 = vld [vmem:[%s4 + $0x30] sm:$0xff]
  %v690 = vld [vmem:[%s4 + $0x38] sm:$0xff]
  %v691 = vld [vmem:[#allocation3] sm:$0xff]
  %v692 = vld [vmem:[#allocation3 + $0x8] sm:$0xff]
  %v693 = vld [vmem:[#allocation3 + $0x10] sm:$0xff]
  %v694 = vld [vmem:[#allocation3 + $0x18] sm:$0xff]
  %v695 = vld [vmem:[#allocation4] sm:$0xff]
  %v696 = vld [vmem:[#allocation4 + $0x8] sm:$0xff]
  %v697 = vld [vmem:[#allocation4 + $0x10] sm:$0xff]
  %v698 = vld [vmem:[#allocation4 + $0x18] sm:$0xff]
  %v700 = vsel %vm199, %v695, 0
  %v703 = vsel %vm199, %v696, 0
  %v706 = vsel %vm199, %v697, 0
  %v709 = vsel %vm199, %v698, 0
  %711 = vmatprep.subr.mxu0 0.0
  %712 = vmatpush1.msra.mxu0 %v687
  %713 = vmatprep.subr.mxu0 0.0
  %714 = vmatpush1.msra.mxu0 %v688
  %715 = vmatprep.subr.mxu0 0.0
  %716 = vmatpush1.msra.mxu0 %v689
  %717 = vmatprep.subr.mxu0 0.0
  %718 = vmatpush1.msra.mxu0 %v690
  %719 = vmatprep.subr.mxu0 0.0
  %720 = vmatpush1.msra.mxu0 0.0
  %721 = vmatprep.subr.mxu0 0.0
  %722 = vmatpush1.msra.mxu0 0.0
  %723 = vmatprep.subr.mxu0 0.0
  %724 = vmatpush1.msra.mxu0 0.0
  %725 = vmatprep.subr.mxu0 0.0
  %726 = vmatpush1.msra.mxu0 0.0
  %727 = vmatprep.subr.mxu0 0.0
  %728 = vmatpush1.msra.mxu0 0.0
  %729 = vmatprep.subr.mxu0 0.0
  %730 = vmatpush1.msra.mxu0 0.0
  %731 = vmatprep.subr.mxu0 0.0
  %732 = vmatpush1.msra.mxu0 0.0
  %733 = vmatprep.subr.mxu0 0.0
  %734 = vmatpush1.msra.mxu0 0.0
  %735 = vmatprep.subr.mxu0 0.0
  %736 = vmatpush1.msra.mxu0 0.0
  %737 = vmatprep.subr.mxu0 0.0
  %738 = vmatpush1.msra.mxu0 0.0
  %739 = vmatprep.subr.mxu0 0.0
  %740 = vmatpush1.msra.mxu0 0.0
  %741 = vmatprep.subr.mxu0 0.0
  %742 = vmatpush1.msra.mxu0 0.0
  %743 = vmatprep.subr.mxu0 0.0
  %744 = vmatpush1.msra.mxu0 0.0
  %745 = vmatprep.subr.mxu0 0.0
  %746 = vmatpush1.msra.mxu0 0.0
  %747 = vmatprep.subr.mxu0 0.0
  %748 = vmatpush1.msra.mxu0 0.0
  %749 = vmatprep.subr.mxu0 0.0
  %750 = vmatpush1.msra.mxu0 0.0
  %751 = vmatprep.subr.mxu0 0.0
  %752 = vmatpush1.msra.mxu0 0.0
  %753 = vmatprep.subr.mxu0 0.0
  %754 = vmatpush1.msra.mxu0 0.0
  %755 = vmatprep.subr.mxu0 0.0
  %756 = vmatpush1.msra.mxu0 0.0
  %757 = vmatprep.subr.mxu0 0.0
  %758 = vmatpush1.msra.mxu0 0.0
  %759 = vmatprep.subr.mxu0 0.0
  %760 = vmatpush1.msra.mxu0 0.0
  %761 = vmatprep.subr.mxu0 0.0
  %762 = vmatpush1.msra.mxu0 0.0
  %763 = vmatprep.subr.mxu0 0.0
  %764 = vmatpush1.msra.mxu0 0.0
  %765 = vmatprep.subr.mxu0 0.0
  %766 = vmatpush1.msra.mxu0 0.0
  %767 = vmatprep.subr.mxu0 0.0
  %768 = vmatpush1.msra.mxu0 0.0
  %769 = vmatprep.subr.mxu0 0.0
  %770 = vmatpush1.msra.mxu0 0.0
  %771 = vmatprep.subr.mxu0 0.0
  %772 = vmatpush1.msra.mxu0 0.0
  %773 = vmatprep.subr.mxu0 0.0
  %774 = vmatpush1.msra.mxu0 0.0
  %775 = vmatprep.mubr.f32.mxu0 0.0
  %776 = vmatmul.mubr.f32.gmra.mrb[0].mxu0 %v700
  %v777 = vpop.f32.mrb[0].mxu0
  %v778 = vadd.f32 0.0, %v777
  %v779 = vpop.f32.mrb[0].mxu0
  %780 = vmatprep.mubr.f32.mxu0 0.0
  %781 = vmatmul.mubr.f32.gmra.mrb[0].mxu0 %v703
  %v782 = vpop.f32.mrb[0].mxu0
  %v783 = vadd.f32 0.0, %v782
  %v784 = vpop.f32.mrb[0].mxu0
  %785 = vmatprep.mubr.f32.mxu0 0.0
  %786 = vmatmul.mubr.f32.gmra.mrb[0].mxu0 %v706
  %v787 = vpop.f32.mrb[0].mxu0
  %v788 = vadd.f32 0.0, %v787
  %v789 = vpop.f32.mrb[0].mxu0
  %790 = vmatprep.mubr.f32.mxu0 0.0
  %791 = vmatmul.mubr.f32.gmra.mrb[0].mxu0 %v709
  %v792 = vpop.f32.mrb[0].mxu0
  %v793 = vadd.f32 0.0, %v792
  %v794 = vpop.f32.mrb[0].mxu0
  %795 = vdwg.mxu0
  %v797 = vsel %vm199, %v691, 0
  %v800 = vsel %vm199, %v692, 0
  %v803 = vsel %vm199, %v693, 0
  %v806 = vsel %vm199, %v694, 0
  %808 = vmatprep.subr.mxu0 0.0
  %809 = vmatpush1.msra.mxu0 %v683
  %810 = vmatprep.subr.mxu0 0.0
  %811 = vmatpush1.msra.mxu0 %v684
  %812 = vmatprep.subr.mxu0 0.0
  %813 = vmatpush1.msra.mxu0 %v685
  %814 = vmatprep.subr.mxu0 0.0
  %815 = vmatpush1.msra.mxu0 %v686
  %816 = vmatprep.subr.mxu0 0.0
  %817 = vmatpush1.msra.mxu0 0.0
  %818 = vmatprep.subr.mxu0 0.0
  %819 = vmatpush1.msra.mxu0 0.0
  %820 = vmatprep.subr.mxu0 0.0
  %821 = vmatpush1.msra.mxu0 0.0
  %822 = vmatprep.subr.mxu0 0.0
  %823 = vmatpush1.msra.mxu0 0.0
  %824 = vmatprep.subr.mxu0 0.0
  %825 = vmatpush1.msra.mxu0 0.0
  %826 = vmatprep.subr.mxu0 0.0
  %827 = vmatpush1.msra.mxu0 0.0
  %828 = vmatprep.subr.mxu0 0.0
  %829 = vmatpush1.msra.mxu0 0.0
  %830 = vmatprep.subr.mxu0 0.0
  %831 = vmatpush1.msra.mxu0 0.0
  %832 = vmatprep.subr.mxu0 0.0
  %833 = vmatpush1.msra.mxu0 0.0
  %834 = vmatprep.subr.mxu0 0.0
  %835 = vmatpush1.msra.mxu0 0.0
  %836 = vmatprep.subr.mxu0 0.0
  %837 = vmatpush1.msra.mxu0 0.0
  %838 = vmatprep.subr.mxu0 0.0
  %839 = vmatpush1.msra.mxu0 0.0
  %840 = vmatprep.subr.mxu0 0.0
  %841 = vmatpush1.msra.mxu0 0.0
  %842 = vmatprep.subr.mxu0 0.0
  %843 = vmatpush1.msra.mxu0 0.0
  %844 = vmatprep.subr.mxu0 0.0
  %845 = vmatpush1.msra.mxu0 0.0
  %846 = vmatprep.subr.mxu0 0.0
  %847 = vmatpush1.msra.mxu0 0.0
  %848 = vmatprep.subr.mxu0 0.0
  %849 = vmatpush1.msra.mxu0 0.0
  %850 = vmatprep.subr.mxu0 0.0
  %851 = vmatpush1.msra.mxu0 0.0
  %852 = vmatprep.subr.mxu0 0.0
  %853 = vmatpush1.msra.mxu0 0.0
  %854 = vmatprep.subr.mxu0 0.0
  %855 = vmatpush1.msra.mxu0 0.0
  %856 = vmatprep.subr.mxu0 0.0
  %857 = vmatpush1.msra.mxu0 0.0
  %858 = vmatprep.subr.mxu0 0.0
  %859 = vmatpush1.msra.mxu0 0.0
  %860 = vmatprep.subr.mxu0 0.0
  %861 = vmatpush1.msra.mxu0 0.0
  %862 = vmatprep.subr.mxu0 0.0
  %863 = vmatpush1.msra.mxu0 0.0
  %864 = vmatprep.subr.mxu0 0.0
  %865 = vmatpush1.msra.mxu0 0.0
  %866 = vmatprep.subr.mxu0 0.0
  %867 = vmatpush1.msra.mxu0 0.0
  %868 = vmatprep.subr.mxu0 0.0
  %869 = vmatpush1.msra.mxu0 0.0
  %870 = vmatprep.subr.mxu0 0.0
  %871 = vmatpush1.msra.mxu0 0.0
  %872 = vmatprep.mubr.f32.mxu0 0.0
  %873 = vmatmul.mubr.f32.gmra.mrb[0].mxu0 %v797
  %v874 = vpop.f32.mrb[0].mxu0
  %v875 = vadd.f32 %v778, %v874
  %v876 = vpop.f32.mrb[0].mxu0
  %877 = vmatprep.mubr.f32.mxu0 0.0
  %878 = vmatmul.mubr.f32.gmra.mrb[0].mxu0 %v800
  %v879 = vpop.f32.mrb[0].mxu0
  %v880 = vadd.f32 %v783, %v879
  %v881 = vpop.f32.mrb[0].mxu0
  %882 = vmatprep.mubr.f32.mxu0 0.0
  %883 = vmatmul.mubr.f32.gmra.mrb[0].mxu0 %v803
  %v884 = vpop.f32.mrb[0].mxu0
  %v885 = vadd.f32 %v788, %v884
  %v886 = vpop.f32.mrb[0].mxu0
  %887 = vmatprep.mubr.f32.mxu0 0.0
  %888 = vmatmul.mubr.f32.gmra.mrb[0].mxu0 %v806
  %v889 = vpop.f32.mrb[0].mxu0
  %v890 = vadd.f32 %v793, %v889
  %v891 = vpop.f32.mrb[0].mxu0
  %892 = vdwg.mxu0
  %v893 = vld [vmem:[%s5] sm:$0x1]
  %v895 = vlaneseq
  %v896 = vshrl.u32 %v895, 7
  %v897 = vsub.s32 0, %v896
  %v898 = vrot.slane %v893, %v897
  %v900 = vadd.f32 %v875, %v898
  %v901 = vadd.f32 %v880, %v898
  %v902 = vadd.f32 %v885, %v898
  %v903 = vadd.f32 %v890, %v898
  %v904 = vld [vmem:[%s6] sm:$0xff]
  %v905 = vld [vmem:[%s6 + $0x8] sm:$0xff]
  %v906 = vld [vmem:[%s6 + $0x10] sm:$0xff]
  %v907 = vld [vmem:[%s6 + $0x18] sm:$0xff]
  %v908 = vld [vmem:[%s7] sm:$0x1]
  %v910 = vlaneseq
  %v911 = vshrl.u32 %v910, 7
  %v912 = vsub.s32 0, %v911
  %v913 = vrot.slane %v908, %v912
  %v916 = vsel %vm199, %v900, 0
  %v919 = vsel %vm199, %v901, 0
  %v922 = vsel %vm199, %v902, 0
  %v925 = vsel %vm199, %v903, 0
  %927 = vmatprep.subr.mxu0 0.0
  %928 = vmatpush1.msra.mxu0 %v904
  %929 = vmatprep.subr.mxu0 0.0
  %930 = vmatpush1.msra.mxu0 %v905
  %931 = vmatprep.subr.mxu0 0.0
  %932 = vmatpush1.msra.mxu0 %v906
  %933 = vmatprep.subr.mxu0 0.0
  %934 = vmatpush1.msra.mxu0 %v907
  %935 = vmatprep.subr.mxu0 0.0
  %936 = vmatpush1.msra.mxu0 0.0
  %937 = vmatprep.subr.mxu0 0.0
  %938 = vmatpush1.msra.mxu0 0.0
  %939 = vmatprep.subr.mxu0 0.0
  %940 = vmatpush1.msra.mxu0 0.0
  %941 = vmatprep.subr.mxu0 0.0
  %942 = vmatpush1.msra.mxu0 0.0
  %943 = vmatprep.subr.mxu0 0.0
  %944 = vmatpush1.msra.mxu0 0.0
  %945 = vmatprep.subr.mxu0 0.0
  %946 = vmatpush1.msra.mxu0 0.0
  %947 = vmatprep.subr.mxu0 0.0
  %948 = vmatpush1.msra.mxu0 0.0
  %949 = vmatprep.subr.mxu0 0.0
  %950 = vmatpush1.msra.mxu0 0.0
  %951 = vmatprep.subr.mxu0 0.0
  %952 = vmatpush1.msra.mxu0 0.0
  %953 = vmatprep.subr.mxu0 0.0
  %954 = vmatpush1.msra.mxu0 0.0
  %955 = vmatprep.subr.mxu0 0.0
  %956 = vmatpush1.msra.mxu0 0.0
  %957 = vmatprep.subr.mxu0 0.0
  %958 = vmatpush1.msra.mxu0 0.0
  %959 = vmatprep.subr.mxu0 0.0
  %960 = vmatpush1.msra.mxu0 0.0
  %961 = vmatprep.subr.mxu0 0.0
  %962 = vmatpush1.msra.mxu0 0.0
  %963 = vmatprep.subr.mxu0 0.0
  %964 = vmatpush1.msra.mxu0 0.0
  %965 = vmatprep.subr.mxu0 0.0
  %966 = vmatpush1.msra.mxu0 0.0
  %967 = vmatprep.subr.mxu0 0.0
  %968 = vmatpush1.msra.mxu0 0.0
  %969 = vmatprep.subr.mxu0 0.0
  %970 = vmatpush1.msra.mxu0 0.0
  %971 = vmatprep.subr.mxu0 0.0
  %972 = vmatpush1.msra.mxu0 0.0
  %973 = vmatprep.subr.mxu0 0.0
  %974 = vmatpush1.msra.mxu0 0.0
  %975 = vmatprep.subr.mxu0 0.0
  %976 = vmatpush1.msra.mxu0 0.0
  %977 = vmatprep.subr.mxu0 0.0
  %978 = vmatpush1.msra.mxu0 0.0
  %979 = vmatprep.subr.mxu0 0.0
  %980 = vmatpush1.msra.mxu0 0.0
  %981 = vmatprep.subr.mxu0 0.0
  %982 = vmatpush1.msra.mxu0 0.0
  %983 = vmatprep.subr.mxu0 0.0
  %984 = vmatpush1.msra.mxu0 0.0
  %985 = vmatprep.subr.mxu0 0.0
  %986 = vmatpush1.msra.mxu0 0.0
  %987 = vmatprep.subr.mxu0 0.0
  %988 = vmatpush1.msra.mxu0 0.0
  %989 = vmatprep.subr.mxu0 0.0
  %990 = vmatpush1.msra.mxu0 0.0
  %991 = vmatprep.mubr.f32.mxu0 0.0
  %992 = vmatmul.mubr.f32.gmra.mrb[0].mxu0 %v916
  %v993 = vpop.f32.mrb[0].mxu0
  %v994 = vadd.f32 %v913, %v993
  %v995 = vpop.f32.mrb[0].mxu0
  %996 = vmatprep.mubr.f32.mxu0 0.0
  %997 = vmatmul.mubr.f32.gmra.mrb[0].mxu0 %v919
  %v998 = vpop.f32.mrb[0].mxu0
  %v999 = vadd.f32 %v913, %v998
  %v1000 = vpop.f32.mrb[0].mxu0
  %1001 = vmatprep.mubr.f32.mxu0 0.0
  %1002 = vmatmul.mubr.f32.gmra.mrb[0].mxu0 %v922
  %v1003 = vpop.f32.mrb[0].mxu0
  %v1004 = vadd.f32 %v913, %v1003
  %v1005 = vpop.f32.mrb[0].mxu0
  %1006 = vmatprep.mubr.f32.mxu0 0.0
  %1007 = vmatmul.mubr.f32.gmra.mrb[0].mxu0 %v925
  %v1008 = vpop.f32.mrb[0].mxu0
  %v1009 = vadd.f32 %v913, %v1008
  %v1010 = vpop.f32.mrb[0].mxu0
  %1011 = vdwg.mxu0
  %vm1012 = vcmask 31744
  %1013 = vst.msk [vmem:[%s8] sm:$0xff] %vm1012, %v994
  %1014 = vst.msk [vmem:[%s8 + $0x8] sm:$0xff] %vm1012, %v999
  %1015 = vst.msk [vmem:[%s8 + $0x10] sm:$0xff] %vm1012, %v1004
  %1016 = vst.msk [vmem:[%s8 + $0x18] sm:$0xff] %vm1012, %v1009
  // Predicated region
  $region34: #{tpu_custom_call.1} parent=0 // pred_check
    _
  $region35: #{tpu_custom_call.1} parent=0 // pred_check_branch
    %1018 = sbr.rel (0) target = $region37
  $region36: #{tpu_custom_call.1} parent=0 // pred_region
    _
  $region37: #{tpu_custom_call.1} parent=0 // pred_fallthru
    _
  // Predicated region
  $region38: #{tpu_custom_call.1} parent=0 // pred_check
    _
  $region39: #{tpu_custom_call.1} parent=0 // pred_check_branch
    %1020 = sbr.rel (0) target = $region41
  $region40: #{tpu_custom_call.1} parent=0 // pred_region
    _
  $region41: #{tpu_custom_call.1} parent=0 // pred_fallthru
    _

</llo_original>
